<compile_context>
chip_gen: v5e
topology: v5e:2x2
jax: 0.10.0
libtpu: 0.0.40
codegen_flags: <defaults>
</compile_context>

<pallas_src>
import functools

import jax
import jax.numpy as jnp
from jax.experimental import pallas as pl
from jax.experimental.pallas import tpu as pltpu

LANE = 128
SUBLANE = 8


def _round_up(n, m):
    return ((n + m - 1) // m) * m


def policy_mlp_kernel(x_ref, w1_ref, b1_ref, w2_ref, b2_ref, w3_ref, b3_ref, o_ref):
    # x/weights are bf16 (MXU operands); accumulation + elementwise path is f32.
    x = x_ref[...]

    h1 = jnp.dot(x, w1_ref[...], preferred_element_type=jnp.float32) + b1_ref[...]
    h1 = jnp.maximum(h1, 0.0)

    h2 = jnp.dot(h1.astype(w2_ref.dtype), w2_ref[...],
                 preferred_element_type=jnp.float32) + b2_ref[...]
    h2 = jnp.maximum(h2, 0.0)

    logits = jnp.dot(h2.astype(w3_ref.dtype), w3_ref[...],
                     preferred_element_type=jnp.float32) + b3_ref[...]
    # Padded action lanes carry a -inf bias (with zero weight columns), so they
    # are -inf here: they never win the max and contribute exp(-inf)=0 to the
    # normalizer. They are sliced away in the wrapper.

    m = jnp.max(logits, axis=-1, keepdims=True)
    shifted = logits - m
    lse = jnp.log(jnp.sum(jnp.exp(shifted), axis=-1, keepdims=True))
    o_ref[...] = (shifted - lse).astype(o_ref.dtype)


@functools.partial(jax.jit, static_argnames=("block_b", "mxu_dtype"))
def policy_network_forward(x, w1, b1, w2, b2, w3, b3, *, block_b=None,
                           mxu_dtype=jnp.bfloat16):
    B, state_dim = x.shape
    h1_dim = w1.shape[1]
    h2_dim = w2.shape[1]
    action_dim = w3.shape[1]

    # ---- batch tile: big enough to amortize ~0.35us/step pipeline overhead,
    #      capped at 256 so large batches give >=2 parallel steps (v7x megacore).
    if block_b is None:
        if B <= 256:
            block_b = max(SUBLANE, _round_up(B, SUBLANE))
        else:
            block_b = 256

    # ---- lane/tile padding (all padding is numerically inert; padded logit
    #      lanes are driven to -inf via the bias so log_softmax ignores them).
    B_pad = _round_up(B, block_b)
    S_pad = _round_up(state_dim, LANE)
    H1_pad = _round_up(h1_dim, LANE)
    H2_pad = _round_up(h2_dim, LANE)
    A_pad = _round_up(action_dim, LANE)

    xp = jnp.pad(x, ((0, B_pad - B), (0, S_pad - state_dim))).astype(mxu_dtype)
    w1p = jnp.pad(w1, ((0, S_pad - state_dim), (0, H1_pad - h1_dim))).astype(mxu_dtype)
    b1p = jnp.pad(b1.reshape(1, -1).astype(jnp.float32), ((0, 0), (0, H1_pad - h1_dim)))
    w2p = jnp.pad(w2, ((0, H1_pad - h1_dim), (0, H2_pad - h2_dim))).astype(mxu_dtype)
    b2p = jnp.pad(b2.reshape(1, -1).astype(jnp.float32), ((0, 0), (0, H2_pad - h2_dim)))
    w3p = jnp.pad(w3, ((0, H2_pad - h2_dim), (0, A_pad - action_dim))).astype(mxu_dtype)
    b3p = jnp.pad(b3.reshape(1, -1).astype(jnp.float32),
                  ((0, 0), (0, A_pad - action_dim)),
                  constant_values=-jnp.inf)

    grid = (B_pad // block_b,)

    # Weights/biases: full blocks with constant index maps -> held resident
    # across batch tiles (no per-step re-DMA).
    full = lambda shape: pl.BlockSpec(shape, lambda i: tuple(0 for _ in shape))

    out = pl.pallas_call(
        policy_mlp_kernel,
        out_shape=jax.ShapeDtypeStruct((B_pad, A_pad), jnp.float32),
        grid_spec=pltpu.PrefetchScalarGridSpec(
            num_scalar_prefetch=0,
            grid=grid,
            in_specs=[
                pl.BlockSpec((block_b, S_pad), lambda i: (i, 0)),  # x tile over batch
                full((S_pad, H1_pad)),
                full((1, H1_pad)),
                full((H1_pad, H2_pad)),
                full((1, H2_pad)),
                full((H2_pad, A_pad)),
                full((1, A_pad)),
            ],
            out_specs=pl.BlockSpec((block_b, A_pad), lambda i: (i, 0)),
        ),
        compiler_params=pltpu.CompilerParams(
            dimension_semantics=("parallel",),
        ),
    )(xp, w1p, b1p, w2p, b2p, w3p, b3p)

    return out[:B, :action_dim]


def init_params(key, state_dim, action_dim):
    """Deterministic init mimicking PyTorch's default Linear init (uniform +/-1/sqrt(fan_in))."""
    dims = [(state_dim, 256), (256, 128), (128, action_dim)]
    params = []
    for (fan_in, fan_out) in dims:
        key, kw, kb = jax.random.split(key, 3)
        bound = 1.0 / jnp.sqrt(float(fan_in))
        w = jax.random.uniform(kw, (fan_in, fan_out), jnp.float32, -bound, bound)
        b = jax.random.uniform(kb, (fan_out,), jnp.float32, -bound, bound)
        params += [w, b]
    return params


def reference_forward(x, w1, b1, w2, b2, w3, b3):
    h1 = jnp.maximum(x @ w1 + b1, 0.0)
    h2 = jnp.maximum(h1 @ w2 + b2, 0.0)
    logits = h2 @ w3 + b3
    return jax.nn.log_softmax(logits, axis=-1)


if __name__ == "__main__":
    state_dim = 32
    action_dim = 8
    batch = 8

    key = jax.random.PRNGKey(0)
    key, kx = jax.random.split(key)
    x = jax.random.normal(kx, (batch, state_dim), jnp.float32)

    w1, b1, w2, b2, w3, b3 = init_params(key, state_dim, action_dim)

    out = policy_network_forward(x, w1, b1, w2, b2, w3, b3)
    out = jax.block_until_ready(out)
    assert out.shape == (batch, action_dim)

    # Loose tolerance vs. f32 reference because MXU operands are bf16.
    ref = reference_forward(x, w1, b1, w2, b2, w3, b3)
    assert jnp.allclose(out, ref, atol=5e-2, rtol=5e-2), "mismatch vs reference"

    # log_softmax invariant: probabilities over the real action lanes sum to 1.
    row_sums = jnp.sum(jnp.exp(out), axis=-1)
    assert jnp.allclose(row_sums, 1.0, atol=1e-3), "log_softmax not normalized"

    print("KERNEL_OK")
</pallas_src>

<mosaic_0001>
module attributes {stable_mosaic.version = 11 : i64} {
  func.func @policy_mlp_kernel(%arg0: i32, %arg1: memref<8x128xbf16, #tpu.memory_space<vmem>>, %arg2: memref<128x256xbf16, #tpu.memory_space<vmem>>, %arg3: memref<1x256xf32, #tpu.memory_space<vmem>>, %arg4: memref<256x128xbf16, #tpu.memory_space<vmem>>, %arg5: memref<1x128xf32, #tpu.memory_space<vmem>>, %arg6: memref<128x128xbf16, #tpu.memory_space<vmem>>, %arg7: memref<1x128xf32, #tpu.memory_space<vmem>>, %arg8: memref<8x128xf32, #tpu.memory_space<vmem>>) attributes {dimension_semantics = [#tpu.dimension_semantics<parallel>], iteration_bounds = array<i64: 1>, scalar_prefetch = 0 : i64, scratch_operands = 0 : i64, tpu.core_type = #tpu.core_type<tc>, window_params = [{transform_indices = @transform_0, window_bounds = array<i64: 8, 128>}, {pipeline_mode = #tpu.pipeline_mode<synchronous>, transform_indices = @transform_1, window_bounds = array<i64: 128, 256>}, {pipeline_mode = #tpu.pipeline_mode<synchronous>, transform_indices = @transform_2, window_bounds = array<i64: 1, 256>}, {pipeline_mode = #tpu.pipeline_mode<synchronous>, transform_indices = @transform_3, window_bounds = array<i64: 256, 128>}, {pipeline_mode = #tpu.pipeline_mode<synchronous>, transform_indices = @transform_4, window_bounds = array<i64: 1, 128>}, {pipeline_mode = #tpu.pipeline_mode<synchronous>, transform_indices = @transform_5, window_bounds = array<i64: 128, 128>}, {pipeline_mode = #tpu.pipeline_mode<synchronous>, transform_indices = @transform_6, window_bounds = array<i64: 1, 128>}, {transform_indices = @transform_7, window_bounds = array<i64: 8, 128>}]} {
    %c0 = arith.constant 0 : index
    %c0_0 = arith.constant 0 : index
    %0 = vector.load %arg1[%c0, %c0_0] : memref<8x128xbf16, #tpu.memory_space<vmem>>, vector<8x128xbf16>
    %c0_1 = arith.constant 0 : index
    %c0_2 = arith.constant 0 : index
    %1 = vector.load %arg2[%c0_1, %c0_2] : memref<128x256xbf16, #tpu.memory_space<vmem>>, vector<128x256xbf16>
    %cst = arith.constant dense<0.000000e+00> : vector<8x256xf32>
    %2 = tpu.matmul %0, %1, %cst {dimension_numbers = #tpu.dot_dimension_numbers<[1], [0], [0], [1], [0, 0, 1, 1], [], []>} : vector<8x128xbf16>, vector<128x256xbf16>, vector<8x256xf32> -> vector<8x256xf32>
    %c0_3 = arith.constant 0 : index
    %c0_4 = arith.constant 0 : index
    %3 = vector.load %arg3[%c0_3, %c0_4] : memref<1x256xf32, #tpu.memory_space<vmem>>, vector<1x256xf32>
    %4 = vector.broadcast %3 : vector<1x256xf32> to vector<8x256xf32>
    %5 = arith.addf %2, %4 : vector<8x256xf32>
    %cst_5 = arith.constant 0.000000e+00 : f32
    %6 = vector.broadcast %cst_5 : f32 to vector<8x256xf32>
    %7 = arith.maximumf %5, %6 : vector<8x256xf32>
    %8 = arith.truncf %7 : vector<8x256xf32> to vector<8x256xbf16>
    %c0_6 = arith.constant 0 : index
    %c0_7 = arith.constant 0 : index
    %9 = vector.load %arg4[%c0_6, %c0_7] : memref<256x128xbf16, #tpu.memory_space<vmem>>, vector<256x128xbf16>
    %cst_8 = arith.constant dense<0.000000e+00> : vector<8x128xf32>
    %10 = tpu.matmul %8, %9, %cst_8 {dimension_numbers = #tpu.dot_dimension_numbers<[1], [0], [0], [1], [0, 0, 1, 1], [], []>} : vector<8x256xbf16>, vector<256x128xbf16>, vector<8x128xf32> -> vector<8x128xf32>
    %c0_9 = arith.constant 0 : index
    %c0_10 = arith.constant 0 : index
    %11 = vector.load %arg5[%c0_9, %c0_10] : memref<1x128xf32, #tpu.memory_space<vmem>>, vector<1x128xf32>
    %12 = vector.broadcast %11 : vector<1x128xf32> to vector<8x128xf32>
    %13 = arith.addf %10, %12 : vector<8x128xf32>
    %cst_11 = arith.constant 0.000000e+00 : f32
    %14 = vector.broadcast %cst_11 : f32 to vector<8x128xf32>
    %15 = arith.maximumf %13, %14 : vector<8x128xf32>
    %16 = arith.truncf %15 : vector<8x128xf32> to vector<8x128xbf16>
    %c0_12 = arith.constant 0 : index
    %c0_13 = arith.constant 0 : index
    %17 = vector.load %arg6[%c0_12, %c0_13] : memref<128x128xbf16, #tpu.memory_space<vmem>>, vector<128x128xbf16>
    %cst_14 = arith.constant dense<0.000000e+00> : vector<8x128xf32>
    %18 = tpu.matmul %16, %17, %cst_14 {dimension_numbers = #tpu.dot_dimension_numbers<[1], [0], [0], [1], [0, 0, 1, 1], [], []>} : vector<8x128xbf16>, vector<128x128xbf16>, vector<8x128xf32> -> vector<8x128xf32>
    %c0_15 = arith.constant 0 : index
    %c0_16 = arith.constant 0 : index
    %19 = vector.load %arg7[%c0_15, %c0_16] : memref<1x128xf32, #tpu.memory_space<vmem>>, vector<1x128xf32>
    %20 = vector.broadcast %19 : vector<1x128xf32> to vector<8x128xf32>
    %21 = arith.addf %18, %20 : vector<8x128xf32>
    %cst_17 = arith.constant dense<0xFF800000> : vector<8xf32>
    %22 = vector.multi_reduction <maximumf>, %21, %cst_17 [1] : vector<8x128xf32> to vector<8xf32>
    %23 = vector.shape_cast %22 : vector<8xf32> to vector<8x1xf32>
    %24 = vector.broadcast %23 : vector<8x1xf32> to vector<8x128xf32>
    %25 = arith.subf %21, %24 : vector<8x128xf32>
    %26 = math.exp %25 : vector<8x128xf32>
    %cst_18 = arith.constant dense<0.000000e+00> : vector<8xf32>
    %27 = vector.multi_reduction <add>, %26, %cst_18 [1] : vector<8x128xf32> to vector<8xf32>
    %28 = vector.shape_cast %27 : vector<8xf32> to vector<8x1xf32>
    %29 = math.log %28 : vector<8x1xf32>
    %30 = vector.broadcast %29 : vector<8x1xf32> to vector<8x128xf32>
    %31 = arith.subf %25, %30 : vector<8x128xf32>
    %c0_19 = arith.constant 0 : index
    %c0_20 = arith.constant 0 : index
    %32 = vector.load %arg8[%c0_19, %c0_20] : memref<8x128xf32, #tpu.memory_space<vmem>>, vector<8x128xf32>
    tpu.vector_store %arg8[%c0_19, %c0_20], %31 {strides = array<i32>} : memref<8x128xf32, #tpu.memory_space<vmem>>, vector<8x128xf32>,
    return
  }
  func.func @transform_0(%arg0: i32) -> (i32, i32) {
    %c0_i32 = arith.constant 0 : i32
    %c0_i32_0 = arith.constant 0 : i32
    return %arg0, %c0_i32 : i32, i32
  }
  func.func @transform_1(%arg0: i32) -> (i32, i32) {
    %c0_i32 = arith.constant 0 : i32
    %c0_i32_0 = arith.constant 0 : i32
    %c0_i32_1 = arith.constant 0 : i32
    return %c0_i32, %c0_i32_0 : i32, i32
  }
  func.func @transform_2(%arg0: i32) -> (i32, i32) {
    %c0_i32 = arith.constant 0 : i32
    %c0_i32_0 = arith.constant 0 : i32
    %c0_i32_1 = arith.constant 0 : i32
    return %c0_i32, %c0_i32_0 : i32, i32
  }
  func.func @transform_3(%arg0: i32) -> (i32, i32) {
    %c0_i32 = arith.constant 0 : i32
    %c0_i32_0 = arith.constant 0 : i32
    %c0_i32_1 = arith.constant 0 : i32
    return %c0_i32, %c0_i32_0 : i32, i32
  }
  func.func @transform_4(%arg0: i32) -> (i32, i32) {
    %c0_i32 = arith.constant 0 : i32
    %c0_i32_0 = arith.constant 0 : i32
    %c0_i32_1 = arith.constant 0 : i32
    return %c0_i32, %c0_i32_0 : i32, i32
  }
  func.func @transform_5(%arg0: i32) -> (i32, i32) {
    %c0_i32 = arith.constant 0 : i32
    %c0_i32_0 = arith.constant 0 : i32
    %c0_i32_1 = arith.constant 0 : i32
    return %c0_i32, %c0_i32_0 : i32, i32
  }
  func.func @transform_6(%arg0: i32) -> (i32, i32) {
    %c0_i32 = arith.constant 0 : i32
    %c0_i32_0 = arith.constant 0 : i32
    %c0_i32_1 = arith.constant 0 : i32
    return %c0_i32, %c0_i32_0 : i32, i32
  }
  func.func @transform_7(%arg0: i32) -> (i32, i32) {
    %c0_i32 = arith.constant 0 : i32
    %c0_i32_0 = arith.constant 0 : i32
    return %arg0, %c0_i32 : i32, i32
  }
}

</mosaic_0001>

<llo_original>
// kernel: policy_network_forward.1
$region0: #{policy_network_forward.1}
  #allocation0 [shape = 'u32[]', space=smem, size = 0x4, offset = 0x4, fixed_abs, tag = 'smem constant byte address 0x4 - core index']
  #allocation1 [shape = 'u32[72,128]{1,0:T(1,128)}', space=vmem, size = 0x9000, scoped, tag = 'internal scratch']
  %s0 = inlined_call_operand.vmem [shape: bf16[8,128], index: 0, kind: input, shape index: {}]
  %s1 = inlined_call_operand.vmem [shape: bf16[128,256], index: 1, kind: input, shape index: {}]
  %s2 = inlined_call_operand.vmem [shape: f32[1,256], index: 2, kind: input, shape index: {}]
  %s3 = inlined_call_operand.vmem [shape: bf16[256,128], index: 3, kind: input, shape index: {}]
  %s4 = inlined_call_operand.vmem [shape: f32[1,128], index: 4, kind: input, shape index: {}]
  %s5 = inlined_call_operand.vmem [shape: bf16[128,128], index: 5, kind: input, shape index: {}]
  %s6 = inlined_call_operand.vmem [shape: f32[1,128], index: 6, kind: input, shape index: {}]
  %s7 = inlined_call_operand.hbm [shape: f32[8,128], index: 7, kind: output, shape index: {}]
  %s8 = sld [smem:[#allocation0]]
  $region38: #{policy_network_forward.1} parent=0
    _
  %s10 = ssub.s32 1, %s8
  %s11 = scalar_select 0, %s10, %s8
  $region1: #{policy_network_forward.1} parent=0
    #allocation2 [shape = 'u8[4096]{0}', space=vmem, size = 0x1000, scoped, tag = 'output window, operand 0, single buffered']
    #allocation3 [shape = 's32[1]{0}', space=sflag, size = 0x4, scoped, tag = 'scoped memory for policy_network_forward.1']
    %12 = vsyncpa [#allocation3], 0
    // Predicated region
    $region2: #{policy_network_forward.1} parent=1 // pred_check
      _
    $region3: #{policy_network_forward.1} parent=1 // pred_check_branch
      %14 = sbr.rel (0) target = $region5
    $region4: #{policy_network_forward.1} parent=1 // pred_region
      _
    $region5: #{policy_network_forward.1} parent=1 // pred_fallthru
      _
    // Predicated region
    $region6: #{policy_network_forward.1} parent=1 // pred_check
      _
    $region7: #{policy_network_forward.1} parent=1 // pred_check_branch
      %16 = sbr.rel (0) target = $region9
    $region8: #{policy_network_forward.1} parent=1 // pred_region
      _
    $region9: #{policy_network_forward.1} parent=1 // pred_fallthru
      _
    // Predicated region
    $region10: #{policy_network_forward.1} parent=1 // pred_check
      _
    $region11: #{policy_network_forward.1} parent=1 // pred_check_branch
      %18 = sbr.rel (0) target = $region13
    $region12: #{policy_network_forward.1} parent=1 // pred_region
      _
    $region13: #{policy_network_forward.1} parent=1 // pred_fallthru
      _
    // Predicated region
    $region14: #{policy_network_forward.1} parent=1 // pred_check
      _
    $region15: #{policy_network_forward.1} parent=1 // pred_check_branch
      %20 = sbr.rel (0) target = $region17
    $region16: #{policy_network_forward.1} parent=1 // pred_region
      _
    $region17: #{policy_network_forward.1} parent=1 // pred_fallthru
      _
    // Predicated region
    $region18: #{policy_network_forward.1} parent=1 // pred_check
      _
    $region19: #{policy_network_forward.1} parent=1 // pred_check_branch
      %22 = sbr.rel (0) target = $region21
    $region20: #{policy_network_forward.1} parent=1 // pred_region
      _
    $region21: #{policy_network_forward.1} parent=1 // pred_fallthru
      _
    // Predicated region
    $region22: #{policy_network_forward.1} parent=1 // pred_check
      _
    $region23: #{policy_network_forward.1} parent=1 // pred_check_branch
      %24 = sbr.rel (0) target = $region25
    $region24: #{policy_network_forward.1} parent=1 // pred_region
      _
    $region25: #{policy_network_forward.1} parent=1 // pred_fallthru
      _
    // Predicated region
    $region26: #{policy_network_forward.1} parent=1 // pred_check
      _
    $region27: #{policy_network_forward.1} parent=1 // pred_check_branch
      %26 = sbr.rel (0) target = $region29
    $region28: #{policy_network_forward.1} parent=1 // pred_region
      _
    $region29: #{policy_network_forward.1} parent=1 // pred_fallthru
      _
    %v27 = vld [vmem:[%s0] sm:$0xf]
    %v28 = vld [vmem:[%s1] sm:$0xff]
    %v29 = vld [vmem:[%s1 + $0x8] sm:$0xff]
    %v30 = vld [vmem:[%s1 + $0x10] sm:$0xff]
    %v31 = vld [vmem:[%s1 + $0x18] sm:$0xff]
    %v32 = vld [vmem:[%s1 + $0x20] sm:$0xff]
    %v33 = vld [vmem:[%s1 + $0x28] sm:$0xff]
    %v34 = vld [vmem:[%s1 + $0x30] sm:$0xff]
    %v35 = vld [vmem:[%s1 + $0x38] sm:$0xff]
    %v36 = vld [vmem:[%s1 + $0x40] sm:$0xff]
    %v37 = vld [vmem:[%s1 + $0x48] sm:$0xff]
    %v38 = vld [vmem:[%s1 + $0x50] sm:$0xff]
    %v39 = vld [vmem:[%s1 + $0x58] sm:$0xff]
    %v40 = vld [vmem:[%s1 + $0x60] sm:$0xff]
    %v41 = vld [vmem:[%s1 + $0x68] sm:$0xff]
    %v42 = vld [vmem:[%s1 + $0x70] sm:$0xff]
    %v43 = vld [vmem:[%s1 + $0x78] sm:$0xff]
    %v44 = vld [vmem:[%s2] sm:$0x3]
    %v46 = vperm.slane %v44, 0
    %v47 = vperm.slane %v44, 1
    %v66 = vunpack.c.l.b16 %v28
    %v67 = vunpack.c.h.b16 %v28
    %v68 = vunpack.c.l.b16 %v29
    %v69 = vunpack.c.h.b16 %v29
    %v70 = vunpack.c.l.b16 %v30
    %v71 = vunpack.c.h.b16 %v30
    %v72 = vunpack.c.l.b16 %v31
    %v73 = vunpack.c.h.b16 %v31
    %v74 = vunpack.c.l.b16 %v32
    %v75 = vunpack.c.h.b16 %v32
    %v76 = vunpack.c.l.b16 %v33
    %v77 = vunpack.c.h.b16 %v33
    %v78 = vunpack.c.l.b16 %v34
    %v79 = vunpack.c.h.b16 %v34
    %v80 = vunpack.c.l.b16 %v35
    %v81 = vunpack.c.h.b16 %v35
    %v82 = vunpack.c.l.b16 %v36
    %v83 = vunpack.c.h.b16 %v36
    %v84 = vunpack.c.l.b16 %v37
    %v85 = vunpack.c.h.b16 %v37
    %v86 = vunpack.c.l.b16 %v38
    %v87 = vunpack.c.h.b16 %v38
    %v88 = vunpack.c.l.b16 %v39
    %v89 = vunpack.c.h.b16 %v39
    %v90 = vunpack.c.l.b16 %v40
    %v91 = vunpack.c.h.b16 %v40
    %v92 = vunpack.c.l.b16 %v41
    %v93 = vunpack.c.h.b16 %v41
    %v94 = vunpack.c.l.b16 %v42
    %v95 = vunpack.c.h.b16 %v42
    %v96 = vunpack.c.l.b16 %v43
    %v97 = vunpack.c.h.b16 %v43
    %v98 = vpack.c.b16 %v68, %v66
    %v99 = vpack.c.b16 %v69, %v67
    %v100 = vpack.c.b16 %v72, %v70
    %v101 = vpack.c.b16 %v73, %v71
    %v102 = vpack.c.b16 %v76, %v74
    %v103 = vpack.c.b16 %v77, %v75
    %v104 = vpack.c.b16 %v80, %v78
    %v105 = vpack.c.b16 %v81, %v79
    %v106 = vpack.c.b16 %v84, %v82
    %v107 = vpack.c.b16 %v85, %v83
    %v108 = vpack.c.b16 %v88, %v86
    %v109 = vpack.c.b16 %v89, %v87
    %v110 = vpack.c.b16 %v92, %v90
    %v111 = vpack.c.b16 %v93, %v91
    %v112 = vpack.c.b16 %v96, %v94
    %v113 = vpack.c.b16 %v97, %v95
    %130 = vmatpush.bf16.msra.mxu0 %v112
    %131 = vmatpush.bf16.msra.mxu0 %v110
    %132 = vmatpush.bf16.msra.mxu0 %v108
    %133 = vmatpush.bf16.msra.mxu0 %v106
    %134 = vmatpush.bf16.msra.mxu0 %v104
    %135 = vmatpush.bf16.msra.mxu0 %v102
    %136 = vmatpush.bf16.msra.mxu0 %v100
    %137 = vmatpush.bf16.msra.mxu0 %v98
    %138 = vmatmul.bf16.gmra.mxu0 %v27
    %v139 = vpop.f32.mrf.mxu0
    %v140 = vadd.f32 %v46, %v139
    %v141 = vpop.f32.mrf.mxu0
    %142 = vdwg.mxu0
    %143 = vmatpush.bf16.msra.mxu0 %v113
    %144 = vmatpush.bf16.msra.mxu0 %v111
    %145 = vmatpush.bf16.msra.mxu0 %v109
    %146 = vmatpush.bf16.msra.mxu0 %v107
    %147 = vmatpush.bf16.msra.mxu0 %v105
    %148 = vmatpush.bf16.msra.mxu0 %v103
    %149 = vmatpush.bf16.msra.mxu0 %v101
    %150 = vmatpush.bf16.msra.mxu0 %v99
    %151 = vmatmul.bf16.gmra.mxu0 %v27
    %v152 = vpop.f32.mrf.mxu0
    %v153 = vadd.f32 %v47, %v152
    %v154 = vpop.f32.mrf.mxu0
    %155 = vdwg.mxu0
    %v156 = vmax.f32 %v140, 0.0
    %v157 = vmax.f32 %v153, 0.0
    %v158 = vpack.c.bf16 %v156, %v156
    %v159 = vpack.c.bf16 %v157, %v157
    %v160 = vld [vmem:[%s3] sm:$0xf]
    %v161 = vld [vmem:[%s3 + $0x4] sm:$0xf]
    %v162 = vld [vmem:[%s3 + $0x8] sm:$0xf]
    %v163 = vld [vmem:[%s3 + $0xc] sm:$0xf]
    %v164 = vld [vmem:[%s3 + $0x10] sm:$0xf]
    %v165 = vld [vmem:[%s3 + $0x14] sm:$0xf]
    %v166 = vld [vmem:[%s3 + $0x18] sm:$0xf]
    %v167 = vld [vmem:[%s3 + $0x1c] sm:$0xf]
    %v168 = vld [vmem:[%s3 + $0x20] sm:$0xf]
    %v169 = vld [vmem:[%s3 + $0x24] sm:$0xf]
    %v170 = vld [vmem:[%s3 + $0x28] sm:$0xf]
    %v171 = vld [vmem:[%s3 + $0x2c] sm:$0xf]
    %v172 = vld [vmem:[%s3 + $0x30] sm:$0xf]
    %v173 = vld [vmem:[%s3 + $0x34] sm:$0xf]
    %v174 = vld [vmem:[%s3 + $0x38] sm:$0xf]
    %v175 = vld [vmem:[%s3 + $0x3c] sm:$0xf]
    %v176 = vld [vmem:[%s3 + $0x40] sm:$0xf]
    %v177 = vld [vmem:[%s3 + $0x44] sm:$0xf]
    %v178 = vld [vmem:[%s3 + $0x48] sm:$0xf]
    %v179 = vld [vmem:[%s3 + $0x4c] sm:$0xf]
    %v180 = vld [vmem:[%s3 + $0x50] sm:$0xf]
    %v181 = vld [vmem:[%s3 + $0x54] sm:$0xf]
    %v182 = vld [vmem:[%s3 + $0x58] sm:$0xf]
    %v183 = vld [vmem:[%s3 + $0x5c] sm:$0xf]
    %v184 = vld [vmem:[%s3 + $0x60] sm:$0xf]
    %v185 = vld [vmem:[%s3 + $0x64] sm:$0xf]
    %v186 = vld [vmem:[%s3 + $0x68] sm:$0xf]
    %v187 = vld [vmem:[%s3 + $0x6c] sm:$0xf]
    %v188 = vld [vmem:[%s3 + $0x70] sm:$0xf]
    %v189 = vld [vmem:[%s3 + $0x74] sm:$0xf]
    %v190 = vld [vmem:[%s3 + $0x78] sm:$0xf]
    %v191 = vld [vmem:[%s3 + $0x7c] sm:$0xf]
    %v192 = vld [vmem:[%s4] sm:$0x1]
    %v194 = vperm.slane %v192, 0
    %v228 = vunpack.c.l.b16 %v160
    %v229 = vunpack.c.l.b16 %v161
    %v230 = vunpack.c.l.b16 %v162
    %v231 = vunpack.c.l.b16 %v163
    %v232 = vunpack.c.l.b16 %v164
    %v233 = vunpack.c.l.b16 %v165
    %v234 = vunpack.c.l.b16 %v166
    %v235 = vunpack.c.l.b16 %v167
    %v236 = vunpack.c.l.b16 %v168
    %v237 = vunpack.c.l.b16 %v169
    %v238 = vunpack.c.l.b16 %v170
    %v239 = vunpack.c.l.b16 %v171
    %v240 = vunpack.c.l.b16 %v172
    %v241 = vunpack.c.l.b16 %v173
    %v242 = vunpack.c.l.b16 %v174
    %v243 = vunpack.c.l.b16 %v175
    %v244 = vunpack.c.l.b16 %v176
    %v245 = vunpack.c.l.b16 %v177
    %v246 = vunpack.c.l.b16 %v178
    %v247 = vunpack.c.l.b16 %v179
    %v248 = vunpack.c.l.b16 %v180
    %v249 = vunpack.c.l.b16 %v181
    %v250 = vunpack.c.l.b16 %v182
    %v251 = vunpack.c.l.b16 %v183
    %v252 = vunpack.c.l.b16 %v184
    %v253 = vunpack.c.l.b16 %v185
    %v254 = vunpack.c.l.b16 %v186
    %v255 = vunpack.c.l.b16 %v187
    %v256 = vunpack.c.l.b16 %v188
    %v257 = vunpack.c.l.b16 %v189
    %v258 = vunpack.c.l.b16 %v190
    %v259 = vunpack.c.l.b16 %v191
    %v260 = vpack.c.b16 %v229, %v228
    %v261 = vpack.c.b16 %v231, %v230
    %v262 = vpack.c.b16 %v233, %v232
    %v263 = vpack.c.b16 %v235, %v234
    %v264 = vpack.c.b16 %v237, %v236
    %v265 = vpack.c.b16 %v239, %v238
    %v266 = vpack.c.b16 %v241, %v240
    %v267 = vpack.c.b16 %v243, %v242
    %v268 = vpack.c.b16 %v245, %v244
    %v269 = vpack.c.b16 %v247, %v246
    %v270 = vpack.c.b16 %v249, %v248
    %v271 = vpack.c.b16 %v251, %v250
    %v272 = vpack.c.b16 %v253, %v252
    %v273 = vpack.c.b16 %v255, %v254
    %v274 = vpack.c.b16 %v257, %v256
    %v275 = vpack.c.b16 %v259, %v258
    %292 = vmatpush.bf16.msra.mxu0 %v267
    %293 = vmatpush.bf16.msra.mxu0 %v266
    %294 = vmatpush.bf16.msra.mxu0 %v265
    %295 = vmatpush.bf16.msra.mxu0 %v264
    %296 = vmatpush.bf16.msra.mxu0 %v263
    %297 = vmatpush.bf16.msra.mxu0 %v262
    %298 = vmatpush.bf16.msra.mxu0 %v261
    %299 = vmatpush.bf16.msra.mxu0 %v260
    %300 = vmatmul.bf16.gmra.mxu0 %v158
    %v301 = vpop.f32.mrf.mxu0
    %v302 = vadd.f32 %v194, %v301
    %v303 = vpop.f32.mrf.mxu0
    %304 = vdwg.mxu0
    %305 = vmatpush.bf16.msra.mxu0 %v275
    %306 = vmatpush.bf16.msra.mxu0 %v274
    %307 = vmatpush.bf16.msra.mxu0 %v273
    %308 = vmatpush.bf16.msra.mxu0 %v272
    %309 = vmatpush.bf16.msra.mxu0 %v271
    %310 = vmatpush.bf16.msra.mxu0 %v270
    %311 = vmatpush.bf16.msra.mxu0 %v269
    %312 = vmatpush.bf16.msra.mxu0 %v268
    %313 = vmatmul.bf16.gmra.mxu0 %v159
    %v314 = vpop.f32.mrf.mxu0
    %v315 = vadd.f32 %v302, %v314
    %v316 = vpop.f32.mrf.mxu0
    %317 = vdwg.mxu0
    %v318 = vmax.f32 %v315, 0.0
    %v319 = vpack.c.bf16 %v318, %v318
    %v320 = vld [vmem:[%s5] sm:$0xf]
    %v321 = vld [vmem:[%s5 + $0x4] sm:$0xf]
    %v322 = vld [vmem:[%s5 + $0x8] sm:$0xf]
    %v323 = vld [vmem:[%s5 + $0xc] sm:$0xf]
    %v324 = vld [vmem:[%s5 + $0x10] sm:$0xf]
    %v325 = vld [vmem:[%s5 + $0x14] sm:$0xf]
    %v326 = vld [vmem:[%s5 + $0x18] sm:$0xf]
    %v327 = vld [vmem:[%s5 + $0x1c] sm:$0xf]
    %v328 = vld [vmem:[%s5 + $0x20] sm:$0xf]
    %v329 = vld [vmem:[%s5 + $0x24] sm:$0xf]
    %v330 = vld [vmem:[%s5 + $0x28] sm:$0xf]
    %v331 = vld [vmem:[%s5 + $0x2c] sm:$0xf]
    %v332 = vld [vmem:[%s5 + $0x30] sm:$0xf]
    %v333 = vld [vmem:[%s5 + $0x34] sm:$0xf]
    %v334 = vld [vmem:[%s5 + $0x38] sm:$0xf]
    %v335 = vld [vmem:[%s5 + $0x3c] sm:$0xf]
    %v336 = vld [vmem:[%s6] sm:$0x1]
    %v338 = vperm.slane %v336, 0
    %v356 = vunpack.c.l.b16 %v320
    %v357 = vunpack.c.l.b16 %v321
    %v358 = vunpack.c.l.b16 %v322
    %v359 = vunpack.c.l.b16 %v323
    %v360 = vunpack.c.l.b16 %v324
    %v361 = vunpack.c.l.b16 %v325
    %v362 = vunpack.c.l.b16 %v326
    %v363 = vunpack.c.l.b16 %v327
    %v364 = vunpack.c.l.b16 %v328
    %v365 = vunpack.c.l.b16 %v329
    %v366 = vunpack.c.l.b16 %v330
    %v367 = vunpack.c.l.b16 %v331
    %v368 = vunpack.c.l.b16 %v332
    %v369 = vunpack.c.l.b16 %v333
    %v370 = vunpack.c.l.b16 %v334
    %v371 = vunpack.c.l.b16 %v335
    %v372 = vpack.c.b16 %v357, %v356
    %v373 = vpack.c.b16 %v359, %v358
    %v374 = vpack.c.b16 %v361, %v360
    %v375 = vpack.c.b16 %v363, %v362
    %v376 = vpack.c.b16 %v365, %v364
    %v377 = vpack.c.b16 %v367, %v366
    %v378 = vpack.c.b16 %v369, %v368
    %v379 = vpack.c.b16 %v371, %v370
    %388 = vmatpush.bf16.msra.mxu0 %v379
    %389 = vmatpush.bf16.msra.mxu0 %v378
    %390 = vmatpush.bf16.msra.mxu0 %v377
    %391 = vmatpush.bf16.msra.mxu0 %v376
    %392 = vmatpush.bf16.msra.mxu0 %v375
    %393 = vmatpush.bf16.msra.mxu0 %v374
    %394 = vmatpush.bf16.msra.mxu0 %v373
    %395 = vmatpush.bf16.msra.mxu0 %v372
    %396 = vmatmul.bf16.gmra.mxu0 %v319
    %v397 = vpop.f32.mrf.mxu0
    %v398 = vadd.f32 %v338, %v397
    %v399 = vpop.f32.mrf.mxu0
    %400 = vdwg.mxu0
    %401 = vmax.xlane.f32.xlu0 %v398
    %v402 = vpop.xlane.xlu0 %401
    %v403 = vsub.f32 %v398, %v402
    %v404 = vmul.f32 %v403, 1.442695
    %v405 = vpow.pop %v404
    %406 = vadd.xlane.f32.xlu0 %v405
    %v407 = vpop.xlane.xlu0 %406
    %v408 = vlog2.pop %v407
    %v409 = vmul.f32 %v408, 0.6931472
    %v410 = vsub.f32 %v403, %v409
    %411 = vst [vmem:[#allocation2] sm:$0xff] %v410
    // Predicated region
    $region30: #{policy_network_forward.1} parent=1 // pred_check
      _
    $region31: #{policy_network_forward.1} parent=1 // pred_check_branch
      %413 = sbr.rel (0) target = $region33
    $region32: #{policy_network_forward.1} parent=1 // pred_region
      %415 = vsyncadd [#allocation3], 0
      %s417 = sshll.u32 [#allocation2], 4
      %s418 = int_to_ptr.vmem [resolvable:$true] %s417
      %s419 = sshll.u32 %s7, 4
      %s420 = int_to_ptr.hbm [resolvable:$true] %s419
      %422 = dma.vmem_to_hbm [thread:$0]  %s418, 128, %s420, [#allocation3]
    $region33: #{policy_network_forward.1} parent=1 // pred_fallthru
      _
    // Predicated region
    $region34: #{policy_network_forward.1} parent=1 // pred_check
      _
    $region35: #{policy_network_forward.1} parent=1 // pred_check_branch
      %424 = sbr.rel (0) target = $region37
    $region36: #{policy_network_forward.1} parent=1 // pred_region
      %426 = dma.done [#allocation3], 128
    $region37: #{policy_network_forward.1} parent=1 // pred_fallthru
      _
    %427 = vsyncpa [#allocation3], 1

</llo_original>
